<compile_context>
chip_gen: v7x
topology: tpu7x:2x2x1
jax: 0.10.0
libtpu: 0.0.40
codegen_flags: <defaults>
</compile_context>

<pallas_src>
import functools

import jax
import jax.numpy as jnp
from jax.experimental import pallas as pl
from jax.experimental.pallas import tpu as pltpu


_LANE = 128


def _row_tile(dtype):
    """Sublane tile for the row axis, matched to dtype packing."""
    return {4: 8, 2: 16, 1: 32}.get(jnp.dtype(dtype).itemsize, 8)


@functools.lru_cache(maxsize=None)
def _vmem_budgets():
    """Per-generation (block_target_bytes, vmem_limit_bytes, deep_input_pipeline)."""
    cap = 64 << 20  # conservative default == v7x per-TC VMEM
    try:
        info = pltpu.get_tpu_info()
        cap = int(getattr(info, "vmem_capacity_bytes", cap) or cap)
    except Exception:
        pass
    if cap >= (96 << 20):
        # v5e / v6e: 128 MiB physical VMEM.  ~8 MiB buffers and a generous
        # explicit limit keep big planes on the fused (2x traffic) path and
        # avoid silently reverting to the 16/32 MiB default scoped VMEM.
        return 8 << 20, 80 << 20, True
    # v7x: 64 MiB per TensorCore.  Same 8 MiB buffers (amortise the ~0.35 us
    # per-step overhead at 3.2 TB/s) but a tighter total budget.
    return 8 << 20, 40 << 20, False


def _in_spec(shape, index_map, buffers=None):
    """BlockSpec with optional deeper pipelining (guarded for API drift)."""
    if buffers is not None and buffers > 2:
        try:
            return pl.BlockSpec(shape, index_map, pipeline_mode=pl.Buffered(buffers))
        except TypeError:
            pass
    return pl.BlockSpec(shape, index_map)


def _choose_rows_per_block(rows, row_bytes, row_tile, block_target):
    """Rows per block: ~block_target bytes, dtype-tile aligned, >=4 grid steps."""
    total = rows * row_bytes
    tm = max(row_tile, (block_target // max(row_bytes, 1)) // row_tile * row_tile)
    if total >= (1 << 20):
        min_steps = 4          # pipelining depth + both v7x TensorCores
    elif total >= (256 << 10):
        min_steps = 2
    else:
        min_steps = 1
    if min_steps > 1 and rows >= min_steps * row_tile:
        tm = max(row_tile, min(tm, (rows // min_steps) // row_tile * row_tile))
    return min(tm, rows)


def _fused_kernel(x_ref, o_ref):
    # x_ref / o_ref: (tm, cols_padded) lane-dense blocks of (n, c) rows.
    x = x_ref[...]
    m = jnp.max(x, axis=-1, keepdims=True)  # max is exact in any float dtype
    o_ref[...] = jnp.exp(x - m).astype(o_ref.dtype)


def _exp_norm_fused(xf, rows, cols_p, *, row_tile, block_target, vmem_limit):
    itemsize = jnp.dtype(xf.dtype).itemsize
    tm = _choose_rows_per_block(rows, cols_p * itemsize, row_tile, block_target)
    return pl.pallas_call(
        _fused_kernel,
        out_shape=jax.ShapeDtypeStruct((rows, cols_p), xf.dtype),
        grid_spec=pltpu.PrefetchScalarGridSpec(
            num_scalar_prefetch=0,
            grid=(pl.cdiv(rows, tm),),
            in_specs=[pl.BlockSpec((tm, cols_p), lambda i: (i, 0))],
            out_specs=pl.BlockSpec((tm, cols_p), lambda i: (i, 0)),
        ),
        compiler_params=pltpu.CompilerParams(
            dimension_semantics=("parallel",),
            vmem_limit_bytes=vmem_limit,
        ),
    )(xf)


def _exp_norm_two_pass(xf, rows, cols, *, row_tile, block_bytes, vmem_limit,
                       deep_input_pipeline):
    """Two-pass fallback for planes too large to fuse within the VMEM budget."""
    itemsize = jnp.dtype(xf.dtype).itemsize
    tm = rows if rows < row_tile else row_tile
    tc = max(_LANE, (block_bytes // (tm * itemsize)) // _LANE * _LANE)
    tc = min(tc, cols)
    row_blocks = pl.cdiv(rows, tm)
    col_blocks = pl.cdiv(cols, tc)
    ragged_cols = (cols % tc) != 0

    # Pass 1: per-row running max, accumulated directly into the resident
    # output block (same (i, 0) block across the "arbitrary" reduction axis).
    def rowmax_kernel(x_ref, m_ref):
        k = pl.program_id(1)

        @pl.when(k == 0)
        def _():
            m_ref[...] = jnp.full(m_ref.shape, -jnp.inf, m_ref.dtype)

        x = x_ref[...].astype(jnp.float32)
        if ragged_cols:  # static: mask out-of-bounds lanes of the edge block
            lane = jax.lax.broadcasted_iota(jnp.int32, x.shape, 1)
            x = jnp.where(k * tc + lane < cols, x, -jnp.inf)
        m_ref[...] = jnp.maximum(m_ref[...], jnp.max(x, axis=-1, keepdims=True))

    row_max = pl.pallas_call(
        rowmax_kernel,
        out_shape=jax.ShapeDtypeStruct((rows, 1), jnp.float32),
        grid_spec=pltpu.PrefetchScalarGridSpec(
            num_scalar_prefetch=0,
            grid=(row_blocks, col_blocks),
            in_specs=[_in_spec((tm, tc), lambda i, k: (i, k),
                               buffers=3 if deep_input_pipeline else None)],
            out_specs=pl.BlockSpec((tm, 1), lambda i, k: (i, 0)),
        ),
        compiler_params=pltpu.CompilerParams(
            dimension_semantics=("parallel", "arbitrary"),
            vmem_limit_bytes=vmem_limit,
        ),
    )(xf)

    # Pass 2: out = exp(x - row_max), computed in the input dtype (bf16 EUP on
    # v6e/v7x).  Casting row_max back to the input dtype is exact since it is
    # the max of that dtype's own values.
    def exp_kernel(x_ref, m_ref, o_ref):
        x = x_ref[...]
        m = m_ref[...].astype(x.dtype)
        o_ref[...] = jnp.exp(x - m).astype(o_ref.dtype)

    return pl.pallas_call(
        exp_kernel,
        out_shape=jax.ShapeDtypeStruct((rows, cols), xf.dtype),
        grid_spec=pltpu.PrefetchScalarGridSpec(
            num_scalar_prefetch=0,
            grid=(row_blocks, col_blocks),
            in_specs=[pl.BlockSpec((tm, tc), lambda i, k: (i, k)),
                      pl.BlockSpec((tm, 1), lambda i, k: (i, 0))],
            out_specs=pl.BlockSpec((tm, tc), lambda i, k: (i, k)),
        ),
        compiler_params=pltpu.CompilerParams(
            dimension_semantics=("parallel", "parallel"),
            vmem_limit_bytes=vmem_limit,
        ),
    )(xf, row_max)


def exp_norm(x):
    """exp(x - per-(n, c) spatial max).  x: (N, C, H, W) float, H == W.

    Non-square inputs are rejected: ExpNorm's `x - MaxPool2d(W)(x)` only
    broadcasts for square planes, so this matches the PyTorch module's
    effective domain.
    """
    N, C, H, W = x.shape
    assert H == W, "ExpNorm (MaxPool2d(W)) requires a square spatial plane"

    rows, cols = N * C, H * W
    itemsize = jnp.dtype(x.dtype).itemsize
    row_tile = _row_tile(x.dtype)
    block_target, vmem_limit, deep_input_pipeline = _vmem_budgets()
    usable = vmem_limit - (4 << 20)  # headroom for compiler scratch

    xf = x.reshape(rows, cols)       # free contiguous reshape -> lane-dense

    # Lane-dense layout: pad the flattened spatial axis to a multiple of 128
    # with -inf (cannot change the per-row max; padded lanes are sliced off).
    pad = (-cols) % _LANE
    cols_p = cols + pad

    # Fused single pass whenever even a minimum-height row block can be
    # double-buffered (2 in + 2 out) inside the per-generation budget.
    min_tm = rows if rows < row_tile else row_tile
    fused_resident = 4 * min_tm * cols_p * itemsize
    if fused_resident <= usable:
        if pad:
            xf = jnp.pad(xf, ((0, 0), (0, pad)), constant_values=-jnp.inf)
        out = _exp_norm_fused(xf, rows, cols_p, row_tile=row_tile,
                              block_target=block_target, vmem_limit=vmem_limit)
        if pad:
            out = out[:, :cols]
    else:
        out = _exp_norm_two_pass(
            xf, rows, cols, row_tile=row_tile,
            block_bytes=min(block_target, usable // 4),
            vmem_limit=vmem_limit, deep_input_pipeline=deep_input_pipeline)
    return out.reshape(N, C, H, W)


if __name__ == "__main__":
    def ref_fn(x):
        return jnp.exp(x - jnp.max(x, axis=(2, 3), keepdims=True))

    k0, k1, k2 = jax.random.split(jax.random.PRNGKey(0), 3)

    # 1) Primary small case (fused path, lane-aligned cols = 256).
    x = jax.random.normal(k0, (2, 4, 16, 16), dtype=jnp.float32)
    out = jax.block_until_ready(exp_norm(x))
    assert out.shape == x.shape
    assert jnp.allclose(out, ref_fn(x), atol=1e-6, rtol=1e-6)

    # 2) Ragged spatial size (7*7 = 49 cols -> padded to 128 in the wrapper).
    x2 = jax.random.normal(k1, (2, 3, 7, 7), dtype=jnp.float32)
    out2 = jax.block_until_ready(exp_norm(x2))
    assert jnp.allclose(out2, ref_fn(x2), atol=1e-6, rtol=1e-6)

    # 3) bf16 (max exact; subtract/exp stay in bf16, matching PyTorch bf16).
    x3 = jax.random.normal(k2, (2, 4, 16, 16), dtype=jnp.bfloat16)
    out3 = jax.block_until_ready(exp_norm(x3))
    ref3 = ref_fn(x3.astype(jnp.float32))
    assert jnp.allclose(out3.astype(jnp.float32), ref3, atol=2e-2, rtol=5e-2)

    # 4) Exercise the two-pass fallback with tiny tiles so the column-block
    #    accumulation and ragged-edge masking paths are covered.
    x4 = jax.random.normal(k0, (2, 2, 50, 50), dtype=jnp.float32)
    _, _vlim, _deep = _vmem_budgets()
    out4 = _exp_norm_two_pass(
        x4.reshape(4, 2500), 4, 2500, row_tile=8, block_bytes=8 << 10,
        vmem_limit=_vlim, deep_input_pipeline=_deep).reshape(x4.shape)
    out4 = jax.block_until_ready(out4)
    assert jnp.allclose(out4, ref_fn(x4), atol=1e-6, rtol=1e-6)

    print("KERNEL_OK")
</pallas_src>

<mosaic_0001>
module attributes {stable_mosaic.version = 11 : i64} {
  func.func @_fused_kernel(%arg0: i32, %arg1: memref<8x256xf32, #tpu.memory_space<vmem>>, %arg2: memref<8x256xf32, #tpu.memory_space<vmem>>) attributes {dimension_semantics = [#tpu.dimension_semantics<parallel>], iteration_bounds = array<i64: 1>, scalar_prefetch = 0 : i64, scratch_operands = 0 : i64, tpu.core_type = #tpu.core_type<tc>, window_params = [{transform_indices = @transform_0, window_bounds = array<i64: 8, 256>}, {transform_indices = @transform_1, window_bounds = array<i64: 8, 256>}]} {
    %c0 = arith.constant 0 : index
    %c0_0 = arith.constant 0 : index
    %0 = vector.load %arg1[%c0, %c0_0] : memref<8x256xf32, #tpu.memory_space<vmem>>, vector<8x256xf32>
    %cst = arith.constant dense<0xFF800000> : vector<8xf32>
    %1 = vector.multi_reduction <maximumf>, %0, %cst [1] : vector<8x256xf32> to vector<8xf32>
    %2 = vector.shape_cast %1 : vector<8xf32> to vector<8x1xf32>
    %3 = vector.broadcast %2 : vector<8x1xf32> to vector<8x256xf32>
    %4 = arith.subf %0, %3 : vector<8x256xf32>
    %5 = math.exp %4 : vector<8x256xf32>
    %c0_1 = arith.constant 0 : index
    %c0_2 = arith.constant 0 : index
    %6 = vector.load %arg2[%c0_1, %c0_2] : memref<8x256xf32, #tpu.memory_space<vmem>>, vector<8x256xf32>
    tpu.vector_store %arg2[%c0_1, %c0_2], %5 {strides = array<i32>} : memref<8x256xf32, #tpu.memory_space<vmem>>, vector<8x256xf32>,
    return
  }
  func.func @transform_0(%arg0: i32) -> (i32, i32) {
    %c0_i32 = arith.constant 0 : i32
    %c0_i32_0 = arith.constant 0 : i32
    return %arg0, %c0_i32 : i32, i32
  }
  func.func @transform_1(%arg0: i32) -> (i32, i32) {
    %c0_i32 = arith.constant 0 : i32
    %c0_i32_0 = arith.constant 0 : i32
    return %arg0, %c0_i32 : i32, i32
  }
}

</mosaic_0001>

<llo_original>
// kernel: tpu_custom_call.1
$region0: #{tpu_custom_call.1}
  #allocation0 [shape = 'u32[]', space=smem, size = 0x4, offset = 0x4, fixed_abs, tag = 'smem constant byte address 0x4 - core index']
  #allocation1 [shape = 'u32[144,128]{1,0:T(1,128)}', space=vmem, size = 0x12000, scoped, tag = 'internal scratch']
  %s0 = inlined_call_operand.hbm [shape: f32[8,256], index: 0, kind: input, shape index: {}]
  %s1 = inlined_call_operand.hbm [shape: f32[8,256], index: 1, kind: output, shape index: {}]
  %s2 = sld [smem:[#allocation0]]
  $region18: #{tpu_custom_call.1} parent=0
    _
  %s4 = ssub.s32 1, %s2
  %s5 = scalar_select 0, %s4, %s2
  $region1: #{tpu_custom_call.1} parent=0
    #allocation2 [shape = 'u8[8192]{0}', space=vmem, size = 0x2000, scoped, tag = 'input window, operand 0, single buffered']
    #allocation3 [shape = 's32[1]{0}', space=sflag, size = 0x4, scoped, tag = 'scoped memory for tpu_custom_call.1']
    #allocation4 [shape = 's32[1]{0}', space=sflag, size = 0x4, scoped, tag = 'scoped memory for tpu_custom_call.1']
    #allocation5 [shape = 'u8[8192]{0}', space=vmem, size = 0x2000, scoped, tag = 'output window, operand 0, single buffered']
    %6 = vsyncpa [#allocation3], 0
    %7 = vsyncpa [#allocation4], 0
    // Predicated region
    $region2: #{tpu_custom_call.1} parent=1 // pred_check
      _
    $region3: #{tpu_custom_call.1} parent=1 // pred_check_branch
      %9 = sbr.rel (0) target = $region5
    $region4: #{tpu_custom_call.1} parent=1 // pred_region
      %s11 = ssub.s32 256, 256
      %12 = vsyncadd [#allocation3], %s11
      %s14 = sshll.u32 [#allocation2], 4
      %s15 = int_to_ptr.vmem [resolvable:$true] %s14
      %17 = dma.hbm_to_vmem [thread:$0]  %s0, 256, %s15, [#allocation3]
    $region5: #{tpu_custom_call.1} parent=1 // pred_fallthru
      _
    // Predicated region
    $region6: #{tpu_custom_call.1} parent=1 // pred_check
      _
    $region7: #{tpu_custom_call.1} parent=1 // pred_check_branch
      %19 = sbr.rel (0) target = $region9
    $region8: #{tpu_custom_call.1} parent=1 // pred_region
      %20 = dma.done [#allocation3], 256
    $region9: #{tpu_custom_call.1} parent=1 // pred_fallthru
      _
    %v21 = vld [vmem:[#allocation2] sm:$0xff]
    %v22 = vld [vmem:[#allocation2 + $0x8] sm:$0xff]
    %v23 = vmax.f32 %v21, %v22
    %24 = vmax.xlane.f32.xlu0 %v23
    %v25 = vpop.xlane.xlu0 %24
    %v26 = vsub.f32 %v21, %v25
    %v27 = vsub.f32 %v22, %v25
    %v28 = vmul.f32 %v26, 1.442695
    %v29 = vpow.pop %v28
    %v30 = vmul.f32 %v27, 1.442695
    %v31 = vpow.pop %v30
    %32 = vst [vmem:[#allocation5] sm:$0xff] %v29
    %33 = vst [vmem:[#allocation5 + $0x8] sm:$0xff] %v31
    // Predicated region
    $region10: #{tpu_custom_call.1} parent=1 // pred_check
      _
    $region11: #{tpu_custom_call.1} parent=1 // pred_check_branch
      %35 = sbr.rel (0) target = $region13
    $region12: #{tpu_custom_call.1} parent=1 // pred_region
      %s37 = ssub.s32 256, 256
      %38 = vsyncadd [#allocation4], %s37
      %s40 = sshll.u32 [#allocation5], 4
      %s41 = int_to_ptr.vmem [resolvable:$true] %s40
      %43 = dma.vmem_to_hbm [thread:$0]  %s41, 256, %s1, [#allocation4]
    $region13: #{tpu_custom_call.1} parent=1 // pred_fallthru
      _
    // Predicated region
    $region14: #{tpu_custom_call.1} parent=1 // pred_check
      _
    $region15: #{tpu_custom_call.1} parent=1 // pred_check_branch
      %45 = sbr.rel (0) target = $region17
    $region16: #{tpu_custom_call.1} parent=1 // pred_region
      %46 = dma.done [#allocation4], 256
    $region17: #{tpu_custom_call.1} parent=1 // pred_fallthru
      _
    %47 = vsyncpa [#allocation3], 1
    %48 = vsyncpa [#allocation4], 1

</llo_original>
